<compile_context>
chip_gen: v5e
topology: v5e:2x2
jax: 0.10.0
libtpu: 0.0.40
codegen_flags: <defaults>
</compile_context>

<pallas_src>
import functools

import jax
import jax.numpy as jnp
from jax.experimental import pallas as pl
from jax.experimental.pallas import tpu as pltpu


def _round_up(n, m):
    return ((n + m - 1) // m) * m


def _fm_kernel(x_ref, vw_ref, s_ref, b_ref, o_ref, *, k):
    """One batch tile of the FM forward.

    x_ref : (TB, P)   bf16  activation tile (batch-tiled)
    vw_ref: (P, K+1)  bf16  fused weight [v | w] (resident across tiles)
    s_ref : (P, 1)    bf16  s = sum_k v[:, k]^2 (resident)
    b_ref : (1, 1)    f32   linear bias (SMEM scalar)
    o_ref : (TB, 1)   f32   prediction tile
    """
    x = x_ref[...]
    vw = vw_ref[...]
    s = s_ref[...]
    b = b_ref[0, 0]

    # One MXU pass computes both x @ v (cols 0..K-1) and x @ w (col K).
    xvw = jnp.dot(x, vw, preferred_element_type=jnp.float32)        # (TB, K+1) f32
    xv = xvw[:, :k]                                                  # (TB, K)
    linear = xvw[:, k:k + 1]                                         # (TB, 1)

    # sum_k (x @ v)_k^2 : VPU square + cross-lane (XLU) reduce over K columns.
    inter1 = jnp.sum(xv * xv, axis=1, keepdims=True)                 # (TB, 1)
    # sum_k (x^2 @ v^2)_k == (x^2) @ s, with s precomputed in the wrapper.
    inter2 = jnp.dot(x * x, s, preferred_element_type=jnp.float32)   # (TB, 1)

    # TODO(synk): nn.Dropout(0.5) is identity in eval mode; training-mode
    # dropout (pltpu.prng_*) intentionally not applied here.
    o_ref[...] = linear + b + 0.5 * (inter1 - inter2)


def fm_pallas(x, v, w_t, bias, *, block_b=1024):
    """FactorizationMachine forward.

    x: (B, P) f32, v: (P, K) f32, w_t: (P, 1) f32, bias: (1, 1) f32 -> (B, 1) f32.
    """
    B, P = x.shape
    K = v.shape[1]

    # --- loop-invariant weight prep (hoisted out of the kernel) ---
    vw = jnp.concatenate([v, w_t], axis=1).astype(jnp.bfloat16)       # (P, K+1)
    s = jnp.sum(v.astype(jnp.float32) ** 2, axis=1,
                keepdims=True).astype(jnp.bfloat16)                   # (P, 1)
    bias = bias.astype(jnp.float32).reshape(1, 1)

    # --- batch tiling ---
    tb = min(block_b, _round_up(B, 8))
    # Keep each double-buffered bf16 x tile <= ~2 MiB so it fits the scoped
    # VMEM default on all of v5e / v6e / v7x even for large P.
    vmem_row_cap = max(8, (((2 * 1024 * 1024) // max(2 * P, 1)) // 8) * 8)
    tb = max(8, min(tb, vmem_row_cap))

    num_tiles = pl.cdiv(B, tb)
    b_pad = num_tiles * tb

    x_bf = x.astype(jnp.bfloat16)
    if b_pad != B:
        x_bf = jnp.pad(x_bf, ((0, b_pad - B), (0, 0)))

    out = pl.pallas_call(
        functools.partial(_fm_kernel, k=K),
        out_shape=jax.ShapeDtypeStruct((b_pad, 1), jnp.float32),
        grid_spec=pltpu.PrefetchScalarGridSpec(
            num_scalar_prefetch=0,
            grid=(num_tiles,),
            in_specs=[
                pl.BlockSpec((tb, P), lambda i: (i, 0)),             # x: batch-tiled
                pl.BlockSpec((P, K + 1), lambda i: (0, 0)),          # [v | w]: resident
                pl.BlockSpec((P, 1), lambda i: (0, 0)),              # s: resident
                pl.BlockSpec(memory_space=pltpu.MemorySpace.SMEM),   # bias scalar
            ],
            out_specs=pl.BlockSpec((tb, 1), lambda i: (i, 0)),
        ),
        compiler_params=pltpu.CompilerParams(
            dimension_semantics=("parallel",),   # batch tiles shard across TCs (v7x)
        ),
    )(x_bf, vw, s, bias)
    return out[:B]


class FMParams:
    """Deterministic parameter init mirroring the PyTorch module shapes."""

    def __init__(self, user_num, item_num, id_embd_num, k=10, seed=0):
        key = jax.random.PRNGKey(seed)
        k_ue, k_ie, k_v, k_w, k_b = jax.random.split(key, 5)
        p = id_embd_num * 2
        # nn.Embedding default init: N(0, 1)
        self.user_embedding = jax.random.normal(
            k_ue, (user_num, id_embd_num), jnp.float32)
        self.item_embedding = jax.random.normal(
            k_ie, (item_num, id_embd_num), jnp.float32)
        # FactorizationMachine: v = rand(p, k) / 10
        self.v = jax.random.uniform(k_v, (p, k), jnp.float32) / 10.0
        # nn.Linear(p, 1): U(-1/sqrt(p), 1/sqrt(p)); store weight transposed (p, 1)
        bound = 1.0 / (p ** 0.5)
        self.w_t = jax.random.uniform(
            k_w, (p, 1), jnp.float32, minval=-bound, maxval=bound)
        self.bias = jax.random.uniform(
            k_b, (1, 1), jnp.float32, minval=-bound, maxval=bound)


def fm_forward(params, user_review, item_review, uid, iid):
    # user_review / item_review are unused by the reference forward pass.
    # TODO(synk): optionally fuse the embedding gather into the kernel via
    # scalar-prefetched uid/iid + pl.Element row indexing once E is
    # production-sized; with E=16 the per-row DMAs are too small to pay off.
    u_id_embd = jnp.take(params.user_embedding, uid, axis=0)          # (B, E)
    i_id_embd = jnp.take(params.item_embedding, iid, axis=0)          # (B, E)
    concat_latent = jnp.concatenate([u_id_embd, i_id_embd], axis=1)   # (B, 2E)
    prediction = fm_pallas(concat_latent, params.v, params.w_t, params.bias)
    # torch.sum(prediction, dim=1).float() on a (B, 1) tensor -> (B,)
    return jnp.sum(prediction, axis=1).astype(jnp.float32)


if __name__ == "__main__":
    key = jax.random.PRNGKey(0)
    k_uid, k_iid, k_ur, k_ir = jax.random.split(key, 4)

    user_num, item_num, id_embd_num = 32, 48, 16
    B, seq = 8, 8

    params = FMParams(user_num, item_num, id_embd_num, k=10, seed=0)

    uid = jax.random.randint(k_uid, (B,), 0, user_num, dtype=jnp.int32)
    iid = jax.random.randint(k_iid, (B,), 0, item_num, dtype=jnp.int32)
    # review tensors are accepted but unused by the forward pass
    user_review = jax.random.randint(k_ur, (B, seq), 0, 100, dtype=jnp.int32)
    item_review = jax.random.randint(k_ir, (B, seq), 0, 100, dtype=jnp.int32)

    out = fm_forward(params, user_review, item_review, uid, iid)
    out = jax.block_until_ready(out)

    # sanity: shape (B,), float32, finite values
    assert out.shape == (B,) and out.dtype == jnp.float32
    assert bool(jnp.all(jnp.isfinite(out)))
    print("KERNEL_OK")
</pallas_src>

<mosaic_0001>
module attributes {stable_mosaic.version = 11 : i64} {
  func.func @_fm_kernel(%arg0: i32, %arg1: memref<8x32xbf16, #tpu.memory_space<vmem>>, %arg2: memref<32x11xbf16, #tpu.memory_space<vmem>>, %arg3: memref<32x1xbf16, #tpu.memory_space<vmem>>, %arg4: memref<1x1xf32, #tpu.memory_space<smem>>, %arg5: memref<8x1xf32, #tpu.memory_space<vmem>>) attributes {dimension_semantics = [#tpu.dimension_semantics<parallel>], iteration_bounds = array<i64: 1>, scalar_prefetch = 0 : i64, scratch_operands = 0 : i64, tpu.core_type = #tpu.core_type<tc>, window_params = [{transform_indices = @transform_0, window_bounds = array<i64: 8, 32>}, {pipeline_mode = #tpu.pipeline_mode<synchronous>, transform_indices = @transform_1, window_bounds = array<i64: 32, 11>}, {pipeline_mode = #tpu.pipeline_mode<synchronous>, transform_indices = @transform_2, window_bounds = array<i64: 32, 1>}, {transform_indices = @transform_3, window_bounds = array<i64: 1, 1>}, {transform_indices = @transform_4, window_bounds = array<i64: 8, 1>}]} {
    %c0 = arith.constant 0 : index
    %c0_0 = arith.constant 0 : index
    %0 = vector.load %arg1[%c0, %c0_0] : memref<8x32xbf16, #tpu.memory_space<vmem>>, vector<8x32xbf16>
    %c0_1 = arith.constant 0 : index
    %c0_2 = arith.constant 0 : index
    %1 = vector.load %arg2[%c0_1, %c0_2] : memref<32x11xbf16, #tpu.memory_space<vmem>>, vector<32x11xbf16>
    %c0_3 = arith.constant 0 : index
    %c0_4 = arith.constant 0 : index
    %2 = vector.load %arg3[%c0_3, %c0_4] : memref<32x1xbf16, #tpu.memory_space<vmem>>, vector<32x1xbf16>
    %c0_5 = arith.constant 0 : index
    %c0_6 = arith.constant 0 : index
    %3 = memref.load %arg4[%c0_5, %c0_6] : memref<1x1xf32, #tpu.memory_space<smem>>
    %cst = arith.constant dense<0.000000e+00> : vector<8x11xf32>
    %4 = tpu.matmul %0, %1, %cst {dimension_numbers = #tpu.dot_dimension_numbers<[1], [0], [0], [1], [0, 0, 1, 1], [], []>} : vector<8x32xbf16>, vector<32x11xbf16>, vector<8x11xf32> -> vector<8x11xf32>
    %5 = vector.extract_strided_slice %4 {offsets = [0, 0], sizes = [8, 10], strides = [1, 1]} : vector<8x11xf32> to vector<8x10xf32>
    %6 = vector.extract_strided_slice %4 {offsets = [0, 10], sizes = [8, 1], strides = [1, 1]} : vector<8x11xf32> to vector<8x1xf32>
    %7 = arith.mulf %5, %5 : vector<8x10xf32>
    %cst_7 = arith.constant dense<0.000000e+00> : vector<8xf32>
    %8 = vector.multi_reduction <add>, %7, %cst_7 [1] : vector<8x10xf32> to vector<8xf32>
    %9 = vector.shape_cast %8 : vector<8xf32> to vector<8x1xf32>
    %10 = arith.mulf %0, %0 : vector<8x32xbf16>
    %cst_8 = arith.constant dense<0.000000e+00> : vector<8x1xf32>
    %11 = tpu.matmul %10, %2, %cst_8 {dimension_numbers = #tpu.dot_dimension_numbers<[1], [0], [0], [1], [0, 0, 1, 1], [], []>} : vector<8x32xbf16>, vector<32x1xbf16>, vector<8x1xf32> -> vector<8x1xf32>
    %12 = vector.broadcast %3 : f32 to vector<8x1xf32>
    %13 = arith.addf %6, %12 : vector<8x1xf32>
    %14 = arith.subf %9, %11 : vector<8x1xf32>
    %cst_9 = arith.constant 5.000000e-01 : f32
    %15 = vector.broadcast %cst_9 : f32 to vector<8x1xf32>
    %16 = arith.mulf %15, %14 : vector<8x1xf32>
    %17 = arith.addf %13, %16 : vector<8x1xf32>
    %c0_10 = arith.constant 0 : index
    %c0_11 = arith.constant 0 : index
    %18 = vector.load %arg5[%c0_10, %c0_11] : memref<8x1xf32, #tpu.memory_space<vmem>>, vector<8x1xf32>
    tpu.vector_store %arg5[%c0_10, %c0_11], %17 {strides = array<i32>} : memref<8x1xf32, #tpu.memory_space<vmem>>, vector<8x1xf32>,
    return
  }
  func.func @transform_0(%arg0: i32) -> (i32, i32) {
    %c0_i32 = arith.constant 0 : i32
    %c0_i32_0 = arith.constant 0 : i32
    return %arg0, %c0_i32 : i32, i32
  }
  func.func @transform_1(%arg0: i32) -> (i32, i32) {
    %c0_i32 = arith.constant 0 : i32
    %c0_i32_0 = arith.constant 0 : i32
    %c0_i32_1 = arith.constant 0 : i32
    return %c0_i32, %c0_i32_0 : i32, i32
  }
  func.func @transform_2(%arg0: i32) -> (i32, i32) {
    %c0_i32 = arith.constant 0 : i32
    %c0_i32_0 = arith.constant 0 : i32
    %c0_i32_1 = arith.constant 0 : i32
    return %c0_i32, %c0_i32_0 : i32, i32
  }
  func.func @transform_3(%arg0: i32) -> (i32, i32) {
    %c0_i32 = arith.constant 0 : i32
    %c0_i32_0 = arith.constant 0 : i32
    %c0_i32_1 = arith.constant 0 : i32
    return %c0_i32, %c0_i32_0 : i32, i32
  }
  func.func @transform_4(%arg0: i32) -> (i32, i32) {
    %c0_i32 = arith.constant 0 : i32
    %c0_i32_0 = arith.constant 0 : i32
    return %arg0, %c0_i32 : i32, i32
  }
}

</mosaic_0001>

<llo_original>
// kernel: tpu_custom_call.1
$region0: #{tpu_custom_call.1}
  #allocation0 [shape = 'u32[]', space=smem, size = 0x4, offset = 0x4, fixed_abs, tag = 'smem constant byte address 0x4 - core index']
  #allocation1 [shape = 'u32[72,128]{1,0:T(1,128)}', space=vmem, size = 0x9000, scoped, tag = 'internal scratch']
  #allocation2 [shape = 'f32[1,1]{1,0:T(1,128)S(6)}', space=smem, size = 0x200, scoped, tag = 'scoped memory for tpu_custom_call.1']
  %s0 = inlined_call_operand.vmem [shape: bf16[8,32], index: 0, kind: input, shape index: {}]
  %s1 = inlined_call_operand.vmem [shape: bf16[32,11], index: 1, kind: input, shape index: {}]
  %s2 = inlined_call_operand.vmem [shape: bf16[32,1], index: 2, kind: input, shape index: {}]
  %s3 = inlined_call_operand.<no memory space> [shape: f32[1,1], index: 3, kind: input, shape index: {}]
  %s4 = inlined_call_operand.vmem [shape: f32[8,1], index: 4, kind: output, shape index: {}]
  %s5 = sld [smem:[#allocation0]]
  $region26: #{tpu_custom_call.1} parent=0
    _
  %s7 = ssub.s32 1, %s5
  %s8 = scalar_select 0, %s7, %s5
  %9 = sst [smem:[#allocation2]] %s3
  // Predicated region
  $region2: #{tpu_custom_call.1} parent=0 // pred_check
    _
  $region3: #{tpu_custom_call.1} parent=0 // pred_check_branch
    %11 = sbr.rel (0) target = $region5
  $region4: #{tpu_custom_call.1} parent=0 // pred_region
    _
  $region5: #{tpu_custom_call.1} parent=0 // pred_fallthru
    _
  // Predicated region
  $region6: #{tpu_custom_call.1} parent=0 // pred_check
    _
  $region7: #{tpu_custom_call.1} parent=0 // pred_check_branch
    %13 = sbr.rel (0) target = $region9
  $region8: #{tpu_custom_call.1} parent=0 // pred_region
    _
  $region9: #{tpu_custom_call.1} parent=0 // pred_fallthru
    _
  // Predicated region
  $region10: #{tpu_custom_call.1} parent=0 // pred_check
    _
  $region11: #{tpu_custom_call.1} parent=0 // pred_check_branch
    %15 = sbr.rel (0) target = $region13
  $region12: #{tpu_custom_call.1} parent=0 // pred_region
    _
  $region13: #{tpu_custom_call.1} parent=0 // pred_fallthru
    _
  // Predicated region
  $region14: #{tpu_custom_call.1} parent=0 // pred_check
    _
  $region15: #{tpu_custom_call.1} parent=0 // pred_check_branch
    %17 = sbr.rel (0) target = $region17
  $region16: #{tpu_custom_call.1} parent=0 // pred_region
    _
  $region17: #{tpu_custom_call.1} parent=0 // pred_fallthru
    _
  %v19 = vld [vmem:[%s0] sm:$0xf]
  %v20 = vld [vmem:[%s1] sm:$0xf]
  %v21 = vld [vmem:[%s1 + $0x4] sm:$0xf]
  %v22 = vld [vmem:[%s1 + $0x8] sm:$0xf]
  %v23 = vld [vmem:[%s1 + $0xc] sm:$0xf]
  %v24 = vld [vmem:[%s2] sm:$0xf]
  %v25 = vld [vmem:[%s2 + $0x4] sm:$0xf]
  %v26 = vld [vmem:[%s2 + $0x8] sm:$0xf]
  %v27 = vld [vmem:[%s2 + $0xc] sm:$0xf]
  %s28 = sld [smem:[#allocation2]]
  %v33 = vunpack.c.l.b16 %v20
  %v34 = vunpack.c.l.b16 %v21
  %v35 = vunpack.c.l.b16 %v22
  %v36 = vunpack.c.l.b16 %v23
  %v37 = vpack.c.b16 %v34, %v33
  %v38 = vpack.c.b16 %v36, %v35
  %vm41 = vcmask 261120
  %v43 = vsel %vm41, %v19, 0
  %45 = vmatpush.bf16.msra.mxu0 0
  %46 = vmatpush.bf16.msra.mxu0 0
  %47 = vmatpush.bf16.msra.mxu0 0
  %48 = vmatpush.bf16.msra.mxu0 0
  %49 = vmatpush.bf16.msra.mxu0 0
  %50 = vmatpush.bf16.msra.mxu0 0
  %51 = vmatpush.bf16.msra.mxu0 %v38
  %52 = vmatpush.bf16.msra.mxu0 %v37
  %53 = vmatmul.bf16.gmra.mxu0 %v43
  %v54 = vpop.f32.mrf.mxu0
  %v55 = vadd.f32 0.0, %v54
  %v56 = vpop.f32.mrf.mxu0
  %57 = vdwg.mxu0
  %v58 = vmul.f32 %v55, %v55
  %vm59 = vcmask 80896
  %v60 = vsel %vm59, %v58, 0.0
  %61 = vadd.xlane.f32.xlu0 %v60
  %v62 = vpop.xlane.xlu0 %61
  %v63 = vunpack.c.l.bf16 %v19
  %v64 = vmul.f32 %v63, %v63
  %v65 = vpack.c.bf16 %v64, %v64
  %v70 = vunpack.c.l.b16 %v24
  %v71 = vunpack.c.l.b16 %v25
  %v72 = vunpack.c.l.b16 %v26
  %v73 = vunpack.c.l.b16 %v27
  %v74 = vpack.c.b16 %v71, %v70
  %v75 = vpack.c.b16 %v73, %v72
  %v79 = vsel %vm41, %v65, 0
  %81 = vmatpush.bf16.msra.mxu0 0
  %82 = vmatpush.bf16.msra.mxu0 0
  %83 = vmatpush.bf16.msra.mxu0 0
  %84 = vmatpush.bf16.msra.mxu0 0
  %85 = vmatpush.bf16.msra.mxu0 0
  %86 = vmatpush.bf16.msra.mxu0 0
  %87 = vmatpush.bf16.msra.mxu0 %v75
  %88 = vmatpush.bf16.msra.mxu0 %v74
  %89 = vmatmul.bf16.gmra.mxu0 %v79
  %v90 = vpop.f32.mrf.mxu0
  %v91 = vadd.f32 0.0, %v90
  %v92 = vpop.f32.mrf.mxu0
  %93 = vdwg.mxu0
  %v94 = vstv %s28
  %v95 = vadd.f32 %v55, %v94
  %v96 = vsub.f32 %v62, %v91
  %v97 = vmul.f32 %v96, 0.5
  %99 = vrot.lane.b32.xlu0 %v97, 10
  %v100 = vpop.permute.xlu0 %99
  %v102 = vadd.f32 %v95, %v100
  %104 = vrot.lane.b32.xlu0 %v102, 118
  %v105 = vpop.permute.xlu0 %104
  %vm107 = vcmask 7168
  %108 = vst.msk [vmem:[%s4] sm:$0xff] %vm107, %v105
  // Predicated region
  $region18: #{tpu_custom_call.1} parent=0 // pred_check
    _
  $region19: #{tpu_custom_call.1} parent=0 // pred_check_branch
    %110 = sbr.rel (0) target = $region21
  $region20: #{tpu_custom_call.1} parent=0 // pred_region
    _
  $region21: #{tpu_custom_call.1} parent=0 // pred_fallthru
    _
  // Predicated region
  $region22: #{tpu_custom_call.1} parent=0 // pred_check
    _
  $region23: #{tpu_custom_call.1} parent=0 // pred_check_branch
    %112 = sbr.rel (0) target = $region25
  $region24: #{tpu_custom_call.1} parent=0 // pred_region
    _
  $region25: #{tpu_custom_call.1} parent=0 // pred_fallthru
    _

</llo_original>
